<compile_context>
chip_gen: v7x
topology: tpu7x:2x2x1
jax: 0.10.0
libtpu: 0.0.40
codegen_flags: <defaults>
</compile_context>

<pallas_src>
import jax
import jax.numpy as jnp
from jax.experimental import pallas as pl
from jax.experimental.pallas import tpu as pltpu

EPS = 1e-5


def _round_up(n, m):
    return ((n + m - 1) // m) * m


def _linear_resnetblock_kernel(x_ref, w_ref, b_ref, g_ref, beta_ref, o_ref):
    # x_ref: (TB, D)   w_ref: (D_out, D_in) as stored by nn.Linear (resident)
    # b_ref, g_ref, beta_ref: (1, D) f32 (resident)
    x = x_ref[...]
    x_f32 = x.astype(jnp.float32)

    # Linear: y = x @ W^T, contracting the input-feature dim of both operands.
    # No transpose of W anywhere; MXU matmul with f32 accumulation.
    y = jax.lax.dot_general(
        x.astype(w_ref.dtype), w_ref[...],
        dimension_numbers=(((1,), (1,)), ((), ())),
        preferred_element_type=jnp.float32,
    )
    y = y + b_ref[...]

    # Dropout (identity in eval) -> ReLU
    y = jnp.maximum(y, 0.0)

    # LayerNorm over last dim: single pass (sum, sum of squares) in f32.
    inv_d = 1.0 / y.shape[-1]
    s = jnp.sum(y, axis=-1, keepdims=True)
    ss = jnp.sum(y * y, axis=-1, keepdims=True)
    mean = s * inv_d
    var = ss * inv_d - mean * mean
    inv_std = jax.lax.rsqrt(var + EPS)
    y = (y - mean) * inv_std * g_ref[...] + beta_ref[...]

    # Residual add + final ReLU.
    o_ref[...] = jnp.maximum(y + x_f32, 0.0).astype(o_ref.dtype)


def linear_resnetblock(x, weight, bias, gamma, beta, *,
                       weight_dtype=jnp.bfloat16, tb=None):
    """x: (B, D). weight: (D_out, D_in) as in nn.Linear, D_out == D_in == D."""
    B, D = x.shape
    assert weight.shape == (D, D), "residual block requires input_size == output_size"

    # Cast (don't transpose) the weight once; it stays resident in VMEM.
    w = weight.astype(weight_dtype)
    b2 = bias.reshape(1, D).astype(jnp.float32)
    g2 = gamma.reshape(1, D).astype(jnp.float32)
    be2 = beta.reshape(1, D).astype(jnp.float32)

    x_bytes = x.dtype.itemsize
    o_bytes = x.dtype.itemsize
    w_bytes = D * D * jnp.dtype(weight_dtype).itemsize
    resident_bytes = w_bytes + 3 * D * 4  # W + bias/gamma/beta

    if tb is None:
        # Conservative budget that fits v7x's 64 MiB VMEM (v5e/v6e have 128 MiB).
        budget = 48 * 1024 * 1024
        per_row = 2 * D * (x_bytes + o_bytes)  # double-buffered x + out tiles
        tb = (budget - resident_bytes) // max(per_row, 1)
        tb = max(8, min(1024, tb))
    tb = min(tb, _round_up(B, 8))
    tb = max(8, (tb // 8) * 8)

    # Pad the batch so the row tile divides it evenly; padded rows are dropped.
    B_pad = _round_up(B, tb)
    x_in = jnp.pad(x, ((0, B_pad - B), (0, 0))) if B_pad != B else x
    grid = (B_pad // tb,)

    needed_vmem = resident_bytes + 2 * tb * D * (x_bytes + o_bytes)
    vmem_limit = max(16 * 1024 * 1024, int(needed_vmem) + 4 * 1024 * 1024)

    out = pl.pallas_call(
        _linear_resnetblock_kernel,
        out_shape=jax.ShapeDtypeStruct((B_pad, D), x.dtype),
        grid=grid,
        in_specs=[
            pl.BlockSpec((tb, D), lambda i: (i, 0)),   # x: tiled over rows
            pl.BlockSpec((D, D), lambda i: (0, 0)),    # W: resident
            pl.BlockSpec((1, D), lambda i: (0, 0)),    # bias: resident
            pl.BlockSpec((1, D), lambda i: (0, 0)),    # gamma: resident
            pl.BlockSpec((1, D), lambda i: (0, 0)),    # beta: resident
        ],
        out_specs=pl.BlockSpec((tb, D), lambda i: (i, 0)),
        compiler_params=pltpu.CompilerParams(
            dimension_semantics=("parallel",),
            vmem_limit_bytes=vmem_limit,
        ),
    )(x_in, w, b2, g2, be2)

    return out[:B] if B_pad != B else out


def _reference(x, weight, bias, gamma, beta, matmul_dtype=jnp.float32):
    y = jnp.dot(x.astype(matmul_dtype), weight.astype(matmul_dtype).T,
                preferred_element_type=jnp.float32) + bias
    y = jnp.maximum(y, 0.0)
    mean = jnp.mean(y, axis=-1, keepdims=True)
    var = jnp.mean((y - mean) ** 2, axis=-1, keepdims=True)
    y = (y - mean) / jnp.sqrt(var + EPS)
    y = y * gamma + beta
    return jnp.maximum(y + x, 0.0)


if __name__ == "__main__":
    key = jax.random.PRNGKey(0)
    # D multiple of 128 -> lane-dense output stores; B padded internally to TB.
    B, D = 64, 128

    kx, kw, kb = jax.random.split(key, 3)
    x = jax.random.normal(kx, (B, D), dtype=jnp.float32)

    # nn.Linear default init: U(-1/sqrt(fan_in), 1/sqrt(fan_in))
    bound = 1.0 / (D ** 0.5)
    weight = jax.random.uniform(kw, (D, D), jnp.float32, -bound, bound)
    bias = jax.random.uniform(kb, (D,), jnp.float32, -bound, bound)

    # nn.LayerNorm default init: gamma=1, beta=0
    gamma = jnp.ones((D,), jnp.float32)
    beta = jnp.zeros((D,), jnp.float32)

    # Fast path: bf16 weights on the MXU, f32 accumulate + f32 LayerNorm.
    out = jax.block_until_ready(linear_resnetblock(x, weight, bias, gamma, beta))
    ref_bf16 = _reference(x, weight, bias, gamma, beta, matmul_dtype=jnp.bfloat16)
    assert out.shape == (B, D)
    assert jnp.allclose(out, ref_bf16, atol=2e-3, rtol=2e-3), "mismatch vs bf16 reference"

    # Full-f32 path matches the PyTorch module's f32 forward.
    out_f32 = jax.block_until_ready(
        linear_resnetblock(x, weight, bias, gamma, beta, weight_dtype=jnp.float32))
    ref_f32 = _reference(x, weight, bias, gamma, beta, matmul_dtype=jnp.float32)
    assert jnp.allclose(out_f32, ref_f32, atol=1e-3, rtol=1e-3), "mismatch vs f32 reference"

    print("KERNEL_OK")
</pallas_src>

<mosaic_0001>
module attributes {stable_mosaic.version = 11 : i64} {
  func.func @_linear_resnetblock_kernel(%arg0: i32, %arg1: memref<64x128xf32, #tpu.memory_space<vmem>>, %arg2: memref<128x128xbf16, #tpu.memory_space<vmem>>, %arg3: memref<1x128xf32, #tpu.memory_space<vmem>>, %arg4: memref<1x128xf32, #tpu.memory_space<vmem>>, %arg5: memref<1x128xf32, #tpu.memory_space<vmem>>, %arg6: memref<64x128xf32, #tpu.memory_space<vmem>>) attributes {dimension_semantics = [#tpu.dimension_semantics<parallel>], iteration_bounds = array<i64: 1>, scalar_prefetch = 0 : i64, scratch_operands = 0 : i64, tpu.core_type = #tpu.core_type<tc>, window_params = [{transform_indices = @transform_0, window_bounds = array<i64: 64, 128>}, {pipeline_mode = #tpu.pipeline_mode<synchronous>, transform_indices = @transform_1, window_bounds = array<i64: 128, 128>}, {pipeline_mode = #tpu.pipeline_mode<synchronous>, transform_indices = @transform_2, window_bounds = array<i64: 1, 128>}, {pipeline_mode = #tpu.pipeline_mode<synchronous>, transform_indices = @transform_3, window_bounds = array<i64: 1, 128>}, {pipeline_mode = #tpu.pipeline_mode<synchronous>, transform_indices = @transform_4, window_bounds = array<i64: 1, 128>}, {transform_indices = @transform_5, window_bounds = array<i64: 64, 128>}]} {
    %c0 = arith.constant 0 : index
    %c0_0 = arith.constant 0 : index
    %0 = vector.load %arg1[%c0, %c0_0] : memref<64x128xf32, #tpu.memory_space<vmem>>, vector<64x128xf32>
    %1 = arith.truncf %0 : vector<64x128xf32> to vector<64x128xbf16>
    %c0_1 = arith.constant 0 : index
    %c0_2 = arith.constant 0 : index
    %2 = vector.load %arg2[%c0_1, %c0_2] : memref<128x128xbf16, #tpu.memory_space<vmem>>, vector<128x128xbf16>
    %cst = arith.constant dense<0.000000e+00> : vector<64x128xf32>
    %3 = tpu.matmul %1, %2, %cst {dimension_numbers = #tpu.dot_dimension_numbers<[1], [1], [0], [0], [0, 0, 1, 0], [], []>} : vector<64x128xbf16>, vector<128x128xbf16>, vector<64x128xf32> -> vector<64x128xf32>
    %c0_3 = arith.constant 0 : index
    %c0_4 = arith.constant 0 : index
    %4 = vector.load %arg3[%c0_3, %c0_4] : memref<1x128xf32, #tpu.memory_space<vmem>>, vector<1x128xf32>
    %5 = vector.broadcast %4 : vector<1x128xf32> to vector<64x128xf32>
    %6 = arith.addf %3, %5 : vector<64x128xf32>
    %cst_5 = arith.constant 0.000000e+00 : f32
    %7 = vector.broadcast %cst_5 : f32 to vector<64x128xf32>
    %8 = arith.maximumf %6, %7 : vector<64x128xf32>
    %cst_6 = arith.constant dense<0.000000e+00> : vector<64xf32>
    %9 = vector.multi_reduction <add>, %8, %cst_6 [1] : vector<64x128xf32> to vector<64xf32>
    %10 = vector.shape_cast %9 : vector<64xf32> to vector<64x1xf32>
    %11 = arith.mulf %8, %8 : vector<64x128xf32>
    %cst_7 = arith.constant dense<0.000000e+00> : vector<64xf32>
    %12 = vector.multi_reduction <add>, %11, %cst_7 [1] : vector<64x128xf32> to vector<64xf32>
    %13 = vector.shape_cast %12 : vector<64xf32> to vector<64x1xf32>
    %cst_8 = arith.constant 7.812500e-03 : f32
    %14 = vector.broadcast %cst_8 : f32 to vector<64x1xf32>
    %15 = arith.mulf %10, %14 : vector<64x1xf32>
    %cst_9 = arith.constant 7.812500e-03 : f32
    %16 = vector.broadcast %cst_9 : f32 to vector<64x1xf32>
    %17 = arith.mulf %13, %16 : vector<64x1xf32>
    %18 = arith.mulf %15, %15 : vector<64x1xf32>
    %19 = arith.subf %17, %18 : vector<64x1xf32>
    %cst_10 = arith.constant 9.99999974E-6 : f32
    %20 = vector.broadcast %cst_10 : f32 to vector<64x1xf32>
    %21 = arith.addf %19, %20 : vector<64x1xf32>
    %22 = math.rsqrt %21 : vector<64x1xf32>
    %23 = vector.broadcast %15 : vector<64x1xf32> to vector<64x128xf32>
    %24 = arith.subf %8, %23 : vector<64x128xf32>
    %25 = vector.broadcast %22 : vector<64x1xf32> to vector<64x128xf32>
    %26 = arith.mulf %24, %25 : vector<64x128xf32>
    %c0_11 = arith.constant 0 : index
    %c0_12 = arith.constant 0 : index
    %27 = vector.load %arg4[%c0_11, %c0_12] : memref<1x128xf32, #tpu.memory_space<vmem>>, vector<1x128xf32>
    %28 = vector.broadcast %27 : vector<1x128xf32> to vector<64x128xf32>
    %29 = arith.mulf %26, %28 : vector<64x128xf32>
    %c0_13 = arith.constant 0 : index
    %c0_14 = arith.constant 0 : index
    %30 = vector.load %arg5[%c0_13, %c0_14] : memref<1x128xf32, #tpu.memory_space<vmem>>, vector<1x128xf32>
    %31 = vector.broadcast %30 : vector<1x128xf32> to vector<64x128xf32>
    %32 = arith.addf %29, %31 : vector<64x128xf32>
    %33 = arith.addf %32, %0 : vector<64x128xf32>
    %cst_15 = arith.constant 0.000000e+00 : f32
    %34 = vector.broadcast %cst_15 : f32 to vector<64x128xf32>
    %35 = arith.maximumf %33, %34 : vector<64x128xf32>
    %c0_16 = arith.constant 0 : index
    %c0_17 = arith.constant 0 : index
    %36 = vector.load %arg6[%c0_16, %c0_17] : memref<64x128xf32, #tpu.memory_space<vmem>>, vector<64x128xf32>
    tpu.vector_store %arg6[%c0_16, %c0_17], %35 {strides = array<i32>} : memref<64x128xf32, #tpu.memory_space<vmem>>, vector<64x128xf32>,
    return
  }
  func.func @transform_0(%arg0: i32) -> (i32, i32) {
    %c0_i32 = arith.constant 0 : i32
    %c0_i32_0 = arith.constant 0 : i32
    return %arg0, %c0_i32 : i32, i32
  }
  func.func @transform_1(%arg0: i32) -> (i32, i32) {
    %c0_i32 = arith.constant 0 : i32
    %c0_i32_0 = arith.constant 0 : i32
    %c0_i32_1 = arith.constant 0 : i32
    return %c0_i32, %c0_i32_0 : i32, i32
  }
  func.func @transform_2(%arg0: i32) -> (i32, i32) {
    %c0_i32 = arith.constant 0 : i32
    %c0_i32_0 = arith.constant 0 : i32
    %c0_i32_1 = arith.constant 0 : i32
    return %c0_i32, %c0_i32_0 : i32, i32
  }
  func.func @transform_3(%arg0: i32) -> (i32, i32) {
    %c0_i32 = arith.constant 0 : i32
    %c0_i32_0 = arith.constant 0 : i32
    %c0_i32_1 = arith.constant 0 : i32
    return %c0_i32, %c0_i32_0 : i32, i32
  }
  func.func @transform_4(%arg0: i32) -> (i32, i32) {
    %c0_i32 = arith.constant 0 : i32
    %c0_i32_0 = arith.constant 0 : i32
    %c0_i32_1 = arith.constant 0 : i32
    return %c0_i32, %c0_i32_0 : i32, i32
  }
  func.func @transform_5(%arg0: i32) -> (i32, i32) {
    %c0_i32 = arith.constant 0 : i32
    %c0_i32_0 = arith.constant 0 : i32
    return %arg0, %c0_i32 : i32, i32
  }
}

</mosaic_0001>

<llo_original>
// kernel: tpu_custom_call.1
$region0: #{tpu_custom_call.1}
  #allocation0 [shape = 'u32[]', space=smem, size = 0x4, offset = 0x4, fixed_abs, tag = 'smem constant byte address 0x4 - core index']
  #allocation1 [shape = 'u32[144,128]{1,0:T(1,128)}', space=vmem, size = 0x12000, scoped, tag = 'internal scratch']
  %s0 = inlined_call_operand.hbm [shape: f32[64,128], index: 0, kind: input, shape index: {}]
  %s1 = inlined_call_operand.hbm [shape: bf16[128,128], index: 1, kind: input, shape index: {}]
  %s2 = inlined_call_operand.vmem [shape: f32[1,128], index: 2, kind: input, shape index: {}]
  %s3 = inlined_call_operand.vmem [shape: f32[1,128], index: 3, kind: input, shape index: {}]
  %s4 = inlined_call_operand.vmem [shape: f32[1,128], index: 4, kind: input, shape index: {}]
  %s5 = inlined_call_operand.hbm [shape: f32[64,128], index: 5, kind: output, shape index: {}]
  %s6 = sld [smem:[#allocation0]]
  $region38: #{tpu_custom_call.1} parent=0
    _
  %s8 = ssub.s32 1, %s6
  %s9 = scalar_select 0, %s8, %s6
  $region1: #{tpu_custom_call.1} parent=0
    #allocation2 [shape = 'u8[32768]{0}', space=vmem, size = 0x8000, scoped, tag = 'input window, operand 0, single buffered']
    #allocation3 [shape = 's32[1]{0}', space=sflag, size = 0x4, scoped, tag = 'scoped memory for tpu_custom_call.1']
    #allocation4 [shape = 's32[1]{0}', space=sflag, size = 0x4, scoped, tag = 'scoped memory for tpu_custom_call.1']
    #allocation5 [shape = 'u8[32768]{0}', space=vmem, size = 0x8000, scoped, tag = 'input window, operand 1, single buffered']
    #allocation6 [shape = 's32[1]{0}', space=sflag, size = 0x4, scoped, tag = 'scoped memory for tpu_custom_call.1']
    #allocation7 [shape = 'u8[32768]{0}', space=vmem, size = 0x8000, scoped, tag = 'output window, operand 0, single buffered']
    %10 = vsyncpa [#allocation3], 0
    %11 = vsyncpa [#allocation6], 0
    %12 = vsyncpa [#allocation4], 0
    // Predicated region
    $region2: #{tpu_custom_call.1} parent=1 // pred_check
      _
    $region3: #{tpu_custom_call.1} parent=1 // pred_check_branch
      %14 = sbr.rel (0) target = $region5
    $region4: #{tpu_custom_call.1} parent=1 // pred_region
      %s16 = ssub.s32 1024, 1024
      %17 = vsyncadd [#allocation3], %s16
      %s18 = sshll.u32 [#allocation2], 4
      %s19 = int_to_ptr.vmem [resolvable:$true] %s18
      %24 = dma.hbm_to_vmem [thread:$0]  %s0, 1024, %s19, [#allocation3], 128, 128, 8
    $region5: #{tpu_custom_call.1} parent=1 // pred_fallthru
      _
    // Predicated region
    $region6: #{tpu_custom_call.1} parent=1 // pred_check
      _
    $region7: #{tpu_custom_call.1} parent=1 // pred_check_branch
      %26 = sbr.rel (0) target = $region9
    $region8: #{tpu_custom_call.1} parent=1 // pred_region
      %s28 = ssub.s32 1024, 1024
      %29 = vsyncadd [#allocation6], %s28
      %s30 = sshll.u32 [#allocation5], 4
      %s31 = int_to_ptr.vmem [resolvable:$true] %s30
      %36 = dma.hbm_to_vmem [thread:$0]  %s1, 1024, %s31, [#allocation6], 64, 64, 4
    $region9: #{tpu_custom_call.1} parent=1 // pred_fallthru
      _
    // Predicated region
    $region10: #{tpu_custom_call.1} parent=1 // pred_check
      _
    $region11: #{tpu_custom_call.1} parent=1 // pred_check_branch
      %38 = sbr.rel (0) target = $region13
    $region12: #{tpu_custom_call.1} parent=1 // pred_region
      _
    $region13: #{tpu_custom_call.1} parent=1 // pred_fallthru
      _
    // Predicated region
    $region14: #{tpu_custom_call.1} parent=1 // pred_check
      _
    $region15: #{tpu_custom_call.1} parent=1 // pred_check_branch
      %40 = sbr.rel (0) target = $region17
    $region16: #{tpu_custom_call.1} parent=1 // pred_region
      _
    $region17: #{tpu_custom_call.1} parent=1 // pred_fallthru
      _
    // Predicated region
    $region18: #{tpu_custom_call.1} parent=1 // pred_check
      _
    $region19: #{tpu_custom_call.1} parent=1 // pred_check_branch
      %42 = sbr.rel (0) target = $region21
    $region20: #{tpu_custom_call.1} parent=1 // pred_region
      _
    $region21: #{tpu_custom_call.1} parent=1 // pred_fallthru
      _
    // Predicated region
    $region22: #{tpu_custom_call.1} parent=1 // pred_check
      _
    $region23: #{tpu_custom_call.1} parent=1 // pred_check_branch
      %44 = sbr.rel (0) target = $region25
    $region24: #{tpu_custom_call.1} parent=1 // pred_region
      %45 = dma.done [#allocation3], 1024
    $region25: #{tpu_custom_call.1} parent=1 // pred_fallthru
      _
    // Predicated region
    $region26: #{tpu_custom_call.1} parent=1 // pred_check
      _
    $region27: #{tpu_custom_call.1} parent=1 // pred_check_branch
      %47 = sbr.rel (0) target = $region29
    $region28: #{tpu_custom_call.1} parent=1 // pred_region
      %48 = dma.done [#allocation6], 1024
    $region29: #{tpu_custom_call.1} parent=1 // pred_fallthru
      _
    %v50 = vld [vmem:[#allocation2] sm:$0xff]
    %v51 = vld [vmem:[#allocation2 + $0x8] sm:$0xff]
    %v52 = vld [vmem:[#allocation2 + $0x10] sm:$0xff]
    %v53 = vld [vmem:[#allocation2 + $0x18] sm:$0xff]
    %v54 = vld [vmem:[#allocation2 + $0x20] sm:$0xff]
    %v55 = vld [vmem:[#allocation2 + $0x28] sm:$0xff]
    %v56 = vld [vmem:[#allocation2 + $0x30] sm:$0xff]
    %v57 = vld [vmem:[#allocation2 + $0x38] sm:$0xff]
    %v58 = vpack.c.bf16 %v51, %v50
    %v59 = vpack.c.bf16 %v53, %v52
    %v60 = vpack.c.bf16 %v55, %v54
    %v61 = vpack.c.bf16 %v57, %v56
    %v62 = vld [vmem:[#allocation5] sm:$0xf]
    %v63 = vld [vmem:[#allocation5 + $0x4] sm:$0xf]
    %v64 = vld [vmem:[#allocation5 + $0x8] sm:$0xf]
    %v65 = vld [vmem:[#allocation5 + $0xc] sm:$0xf]
    %v66 = vld [vmem:[#allocation5 + $0x10] sm:$0xf]
    %v67 = vld [vmem:[#allocation5 + $0x14] sm:$0xf]
    %v68 = vld [vmem:[#allocation5 + $0x18] sm:$0xf]
    %v69 = vld [vmem:[#allocation5 + $0x1c] sm:$0xf]
    %v70 = vld [vmem:[#allocation5 + $0x20] sm:$0xf]
    %v71 = vld [vmem:[#allocation5 + $0x24] sm:$0xf]
    %v72 = vld [vmem:[#allocation5 + $0x28] sm:$0xf]
    %v73 = vld [vmem:[#allocation5 + $0x2c] sm:$0xf]
    %v74 = vld [vmem:[#allocation5 + $0x30] sm:$0xf]
    %v75 = vld [vmem:[#allocation5 + $0x34] sm:$0xf]
    %v76 = vld [vmem:[#allocation5 + $0x38] sm:$0xf]
    %v77 = vld [vmem:[#allocation5 + $0x3c] sm:$0xf]
    %v78 = vld [vmem:[%s2] sm:$0x1]
    %v80 = vlaneseq
    %v81 = vshrl.u32 %v80, 7
    %v82 = vsub.s32 0, %v81
    %v83 = vrot.slane %v78, %v82
    %v101 = vunpack.c.l.b16 %v62
    %v102 = vunpack.c.l.b16 %v63
    %v103 = vunpack.c.l.b16 %v64
    %v104 = vunpack.c.l.b16 %v65
    %v105 = vunpack.c.l.b16 %v66
    %v106 = vunpack.c.l.b16 %v67
    %v107 = vunpack.c.l.b16 %v68
    %v108 = vunpack.c.l.b16 %v69
    %v109 = vunpack.c.l.b16 %v70
    %v110 = vunpack.c.l.b16 %v71
    %v111 = vunpack.c.l.b16 %v72
    %v112 = vunpack.c.l.b16 %v73
    %v113 = vunpack.c.l.b16 %v74
    %v114 = vunpack.c.l.b16 %v75
    %v115 = vunpack.c.l.b16 %v76
    %v116 = vunpack.c.l.b16 %v77
    %v117 = vpack.c.b16 %v102, %v101
    %v118 = vpack.c.b16 %v104, %v103
    %v119 = vpack.c.b16 %v106, %v105
    %v120 = vpack.c.b16 %v108, %v107
    %v121 = vpack.c.b16 %v110, %v109
    %v122 = vpack.c.b16 %v112, %v111
    %v123 = vpack.c.b16 %v114, %v113
    %v124 = vpack.c.b16 %v116, %v115
    %133 = vmatprep.subr.bf16.mxu0 0
    %134 = vmatpush1.bf16.xpose.msra.mxu0 %v117
    %135 = vmatprep.subr.bf16.mxu0 0
    %136 = vmatpush1.bf16.xpose.msra.mxu0 %v118
    %137 = vmatprep.subr.bf16.mxu0 0
    %138 = vmatpush1.bf16.xpose.msra.mxu0 %v119
    %139 = vmatprep.subr.bf16.mxu0 0
    %140 = vmatpush1.bf16.xpose.msra.mxu0 %v120
    %141 = vmatprep.subr.bf16.mxu0 0
    %142 = vmatpush1.bf16.xpose.msra.mxu0 %v121
    %143 = vmatprep.subr.bf16.mxu0 0
    %144 = vmatpush1.bf16.xpose.msra.mxu0 %v122
    %145 = vmatprep.subr.bf16.mxu0 0
    %146 = vmatpush1.bf16.xpose.msra.mxu0 %v123
    %147 = vmatprep.subr.bf16.mxu0 0
    %148 = vmatpush1.bf16.xpose.msra.mxu0 %v124
    %149 = vmatprep.subr.bf16.mxu0 0
    %150 = vmatpush1.bf16.xpose.msra.mxu0 0
    %151 = vmatprep.subr.bf16.mxu0 0
    %152 = vmatpush1.bf16.xpose.msra.mxu0 0
    %153 = vmatprep.subr.bf16.mxu0 0
    %154 = vmatpush1.bf16.xpose.msra.mxu0 0
    %155 = vmatprep.subr.bf16.mxu0 0
    %156 = vmatpush1.bf16.xpose.msra.mxu0 0
    %157 = vmatprep.subr.bf16.mxu0 0
    %158 = vmatpush1.bf16.xpose.msra.mxu0 0
    %159 = vmatprep.subr.bf16.mxu0 0
    %160 = vmatpush1.bf16.xpose.msra.mxu0 0
    %161 = vmatprep.subr.bf16.mxu0 0
    %162 = vmatpush1.bf16.xpose.msra.mxu0 0
    %163 = vmatprep.subr.bf16.mxu0 0
    %164 = vmatpush1.bf16.xpose.msra.mxu0 0
    %165 = vmatprep.mubr.bf16.mxu0 0
    %166 = vmatmul.mubr.bf16.gmra.mrb[0].mxu0 %v58
    %v167 = vpop.f32.mrb[0].mxu0
    %v168 = vadd.f32 %v83, %v167
    %v169 = vpop.f32.mrb[0].mxu0
    %v170 = vpop.f32.mrb[0].mxu0
    %v171 = vadd.f32 %v83, %v170
    %v172 = vpop.f32.mrb[0].mxu0
    %173 = vmatprep.mubr.bf16.mxu0 0
    %174 = vmatmul.mubr.bf16.gmra.mrb[0].mxu0 %v59
    %v175 = vpop.f32.mrb[0].mxu0
    %v176 = vadd.f32 %v83, %v175
    %v177 = vpop.f32.mrb[0].mxu0
    %v178 = vpop.f32.mrb[0].mxu0
    %v179 = vadd.f32 %v83, %v178
    %v180 = vpop.f32.mrb[0].mxu0
    %181 = vmatprep.mubr.bf16.mxu0 0
    %182 = vmatmul.mubr.bf16.gmra.mrb[0].mxu0 %v60
    %v183 = vpop.f32.mrb[0].mxu0
    %v184 = vadd.f32 %v83, %v183
    %v185 = vpop.f32.mrb[0].mxu0
    %v186 = vpop.f32.mrb[0].mxu0
    %v187 = vadd.f32 %v83, %v186
    %v188 = vpop.f32.mrb[0].mxu0
    %189 = vmatprep.mubr.bf16.mxu0 0
    %190 = vmatmul.mubr.bf16.gmra.mrb[0].mxu0 %v61
    %v191 = vpop.f32.mrb[0].mxu0
    %v192 = vadd.f32 %v83, %v191
    %v193 = vpop.f32.mrb[0].mxu0
    %v194 = vpop.f32.mrb[0].mxu0
    %v195 = vadd.f32 %v83, %v194
    %v196 = vpop.f32.mrb[0].mxu0
    %197 = vdwg.mxu0
    %v198 = vmax.f32 %v168, 0.0
    %v199 = vmax.f32 %v171, 0.0
    %v200 = vmax.f32 %v176, 0.0
    %v201 = vmax.f32 %v179, 0.0
    %v202 = vmax.f32 %v184, 0.0
    %v203 = vmax.f32 %v187, 0.0
    %v204 = vmax.f32 %v192, 0.0
    %v205 = vmax.f32 %v195, 0.0
    %206 = vadd.xlane.f32.xlu0 %v198
    %v207 = vpop.xlane.xlu0 %206
    %208 = vadd.xlane.f32.xlu0 %v199
    %v209 = vpop.xlane.xlu0 %208
    %210 = vadd.xlane.f32.xlu0 %v200
    %v211 = vpop.xlane.xlu0 %210
    %212 = vadd.xlane.f32.xlu0 %v201
    %v213 = vpop.xlane.xlu0 %212
    %214 = vadd.xlane.f32.xlu0 %v202
    %v215 = vpop.xlane.xlu0 %214
    %216 = vadd.xlane.f32.xlu0 %v203
    %v217 = vpop.xlane.xlu0 %216
    %218 = vadd.xlane.f32.xlu0 %v204
    %v219 = vpop.xlane.xlu0 %218
    %220 = vadd.xlane.f32.xlu0 %v205
    %v221 = vpop.xlane.xlu0 %220
    %v222 = vmul.f32 %v198, %v198
    %v223 = vmul.f32 %v199, %v199
    %v224 = vmul.f32 %v200, %v200
    %v225 = vmul.f32 %v201, %v201
    %v226 = vmul.f32 %v202, %v202
    %v227 = vmul.f32 %v203, %v203
    %v228 = vmul.f32 %v204, %v204
    %v229 = vmul.f32 %v205, %v205
    %230 = vadd.xlane.f32.xlu0 %v222
    %v231 = vpop.xlane.xlu0 %230
    %232 = vadd.xlane.f32.xlu0 %v223
    %v233 = vpop.xlane.xlu0 %232
    %234 = vadd.xlane.f32.xlu0 %v224
    %v235 = vpop.xlane.xlu0 %234
    %236 = vadd.xlane.f32.xlu0 %v225
    %v237 = vpop.xlane.xlu0 %236
    %238 = vadd.xlane.f32.xlu0 %v226
    %v239 = vpop.xlane.xlu0 %238
    %240 = vadd.xlane.f32.xlu0 %v227
    %v241 = vpop.xlane.xlu0 %240
    %242 = vadd.xlane.f32.xlu0 %v228
    %v243 = vpop.xlane.xlu0 %242
    %244 = vadd.xlane.f32.xlu0 %v229
    %v245 = vpop.xlane.xlu0 %244
    %v246 = vmul.f32 %v207, 0.0078125
    %v247 = vmul.f32 %v209, 0.0078125
    %v248 = vmul.f32 %v211, 0.0078125
    %v249 = vmul.f32 %v213, 0.0078125
    %v250 = vmul.f32 %v215, 0.0078125
    %v251 = vmul.f32 %v217, 0.0078125
    %v252 = vmul.f32 %v219, 0.0078125
    %v253 = vmul.f32 %v221, 0.0078125
    %v254 = vmul.f32 %v231, 0.0078125
    %v255 = vmul.f32 %v233, 0.0078125
    %v256 = vmul.f32 %v235, 0.0078125
    %v257 = vmul.f32 %v237, 0.0078125
    %v258 = vmul.f32 %v239, 0.0078125
    %v259 = vmul.f32 %v241, 0.0078125
    %v260 = vmul.f32 %v243, 0.0078125
    %v261 = vmul.f32 %v245, 0.0078125
    %v262 = vmul.f32 %v246, %v246
    %v263 = vmul.f32 %v247, %v247
    %v264 = vmul.f32 %v248, %v248
    %v265 = vmul.f32 %v249, %v249
    %v266 = vmul.f32 %v250, %v250
    %v267 = vmul.f32 %v251, %v251
    %v268 = vmul.f32 %v252, %v252
    %v269 = vmul.f32 %v253, %v253
    %v270 = vsub.f32 %v254, %v262
    %v271 = vsub.f32 %v255, %v263
    %v272 = vsub.f32 %v256, %v264
    %v273 = vsub.f32 %v257, %v265
    %v274 = vsub.f32 %v258, %v266
    %v275 = vsub.f32 %v259, %v267
    %v276 = vsub.f32 %v260, %v268
    %v277 = vsub.f32 %v261, %v269
    %v278 = vadd.f32 %v270, 1e-05
    %v279 = vadd.f32 %v271, 1e-05
    %v280 = vadd.f32 %v272, 1e-05
    %v281 = vadd.f32 %v273, 1e-05
    %v282 = vadd.f32 %v274, 1e-05
    %v283 = vadd.f32 %v275, 1e-05
    %v284 = vadd.f32 %v276, 1e-05
    %v285 = vadd.f32 %v277, 1e-05
    %v286 = vrsqrt.pop %v278
    %v287 = vrsqrt.pop %v279
    %v288 = vrsqrt.pop %v280
    %v289 = vrsqrt.pop %v281
    %v290 = vrsqrt.pop %v282
    %v291 = vrsqrt.pop %v283
    %v292 = vrsqrt.pop %v284
    %v293 = vrsqrt.pop %v285
    %v294 = vsub.f32 %v198, %v246
    %v295 = vsub.f32 %v199, %v247
    %v296 = vsub.f32 %v200, %v248
    %v297 = vsub.f32 %v201, %v249
    %v298 = vsub.f32 %v202, %v250
    %v299 = vsub.f32 %v203, %v251
    %v300 = vsub.f32 %v204, %v252
    %v301 = vsub.f32 %v205, %v253
    %v302 = vmul.f32 %v294, %v286
    %v303 = vmul.f32 %v295, %v287
    %v304 = vmul.f32 %v296, %v288
    %v305 = vmul.f32 %v297, %v289
    %v306 = vmul.f32 %v298, %v290
    %v307 = vmul.f32 %v299, %v291
    %v308 = vmul.f32 %v300, %v292
    %v309 = vmul.f32 %v301, %v293
    %v310 = vld [vmem:[%s3] sm:$0x1]
    %v312 = vlaneseq
    %v313 = vshrl.u32 %v312, 7
    %v314 = vsub.s32 0, %v313
    %v315 = vrot.slane %v310, %v314
    %v317 = vmul.f32 %v302, %v315
    %v318 = vmul.f32 %v303, %v315
    %v319 = vmul.f32 %v304, %v315
    %v320 = vmul.f32 %v305, %v315
    %v321 = vmul.f32 %v306, %v315
    %v322 = vmul.f32 %v307, %v315
    %v323 = vmul.f32 %v308, %v315
    %v324 = vmul.f32 %v309, %v315
    %v325 = vld [vmem:[%s4] sm:$0x1]
    %v327 = vlaneseq
    %v328 = vshrl.u32 %v327, 7
    %v329 = vsub.s32 0, %v328
    %v330 = vrot.slane %v325, %v329
    %v332 = vadd.f32 %v317, %v330
    %v333 = vadd.f32 %v318, %v330
    %v334 = vadd.f32 %v319, %v330
    %v335 = vadd.f32 %v320, %v330
    %v336 = vadd.f32 %v321, %v330
    %v337 = vadd.f32 %v322, %v330
    %v338 = vadd.f32 %v323, %v330
    %v339 = vadd.f32 %v324, %v330
    %v340 = vadd.f32 %v332, %v50
    %v341 = vadd.f32 %v333, %v51
    %v342 = vadd.f32 %v334, %v52
    %v343 = vadd.f32 %v335, %v53
    %v344 = vadd.f32 %v336, %v54
    %v345 = vadd.f32 %v337, %v55
    %v346 = vadd.f32 %v338, %v56
    %v347 = vadd.f32 %v339, %v57
    %v348 = vmax.f32 %v340, 0.0
    %v349 = vmax.f32 %v341, 0.0
    %v350 = vmax.f32 %v342, 0.0
    %v351 = vmax.f32 %v343, 0.0
    %v352 = vmax.f32 %v344, 0.0
    %v353 = vmax.f32 %v345, 0.0
    %v354 = vmax.f32 %v346, 0.0
    %v355 = vmax.f32 %v347, 0.0
    %356 = vst [vmem:[#allocation7] sm:$0xff] %v348
    %357 = vst [vmem:[#allocation7 + $0x8] sm:$0xff] %v349
    %358 = vst [vmem:[#allocation7 + $0x10] sm:$0xff] %v350
    %359 = vst [vmem:[#allocation7 + $0x18] sm:$0xff] %v351
    %360 = vst [vmem:[#allocation7 + $0x20] sm:$0xff] %v352
    %361 = vst [vmem:[#allocation7 + $0x28] sm:$0xff] %v353
    %362 = vst [vmem:[#allocation7 + $0x30] sm:$0xff] %v354
    %363 = vst [vmem:[#allocation7 + $0x38] sm:$0xff] %v355
    // Predicated region
    $region30: #{tpu_custom_call.1} parent=1 // pred_check
      _
    $region31: #{tpu_custom_call.1} parent=1 // pred_check_branch
      %365 = sbr.rel (0) target = $region33
    $region32: #{tpu_custom_call.1} parent=1 // pred_region
      %s367 = ssub.s32 1024, 1024
      %368 = vsyncadd [#allocation4], %s367
      %s369 = sshll.u32 [#allocation7], 4
      %s370 = int_to_ptr.vmem [resolvable:$true] %s369
      %375 = dma.vmem_to_hbm [thread:$0]  %s370, 1024, %s5, [#allocation4], 128, 128, 8
    $region33: #{tpu_custom_call.1} parent=1 // pred_fallthru
      _
    // Predicated region
    $region34: #{tpu_custom_call.1} parent=1 // pred_check
      _
    $region35: #{tpu_custom_call.1} parent=1 // pred_check_branch
      %377 = sbr.rel (0) target = $region37
    $region36: #{tpu_custom_call.1} parent=1 // pred_region
      %378 = dma.done [#allocation4], 1024
    $region37: #{tpu_custom_call.1} parent=1 // pred_fallthru
      _
    %379 = vsyncpa [#allocation3], 1
    %380 = vsyncpa [#allocation6], 1
    %381 = vsyncpa [#allocation4], 1

</llo_original>
